<compile_context>
chip_gen: v7x
topology: tpu7x:2x2x1
jax: 0.10.0
libtpu: 0.0.40
codegen_flags: <defaults>
</compile_context>

<pallas_src>
import functools

import numpy as np
import jax
import jax.numpy as jnp
from jax import lax
from jax.experimental import pallas as pl
from jax.experimental.pallas import tpu as pltpu

# Deterministic constant table taken verbatim from the reference target_map.
_TARGET_TABLE = np.array([
    [0, 0.333, 0.333, 0.333, 0.333, 0.333, 0.333, 0.333, 0.333, 0.333],
    [1, 0.0, 0.0, 0.0, 0.0, 0.0, 0.0, 0.0, 0.0, 0.0],
    [0, -0.118, 0.943, -0.118, -0.118, -0.118, -0.118, -0.118, -0.118, -0.118],
    [0, -0.134, 1.78e-16, 0.935, -0.134, -0.134, -0.134, -0.134, -0.134, -0.134],
    [0, -0.154, 1.999e-16, 3.997e-16, 0.926, -0.154, -0.154, -0.154, -0.154, -0.154],
    [0, -0.183, 1.824e-16, 3.953e-16, 6.081e-17, 0.913, -0.183, -0.183, -0.183, -0.183],
    [0, -0.224, 1.738e-16, 4.469e-16, 7.448e-17, -9.93e-17, 0.894, -0.224, -0.224, -0.224],
    [0, -0.289, 2.134e-16, 4.914e-16, 6.41e-17, -1.282e-16, 1.282e-16, 0.866, -0.289, -0.289],
    [0, -0.408, 3.108e-16, 7.576e-16, 9.712e-17, -1.165e-16, 2.331e-16, -3.885e-17, 0.816, -0.408],
    [0, -0.707, 5.103e-16, 1.178e-15, 1.963e-16, -1.57e-16, 3.14e-16, -3.925e-17, -2.355e-16, 0.707],
], dtype=np.float64)

_NUM_CLASSES = _TARGET_TABLE.shape[0]   # 10
_FEAT_DIM = _TARGET_TABLE.shape[1]      # 10

# Pre-normalized rows: <x1, table_n[c]> = s12 / ||x2||, so ||x2|| never needs
# to be computed in the kernel (differences vs. the reference are ~1 ulp).
_TABLE_NORMED = _TARGET_TABLE / np.linalg.norm(_TARGET_TABLE, axis=1, keepdims=True)


def _cosine_loss_kernel(x1t_ref, tgt_ref, tabn_ref, out_ref, acc_ref, *,
                        tile_cols, tiles_per_split, batch, padded_cols):
    j = pl.program_id(1)                       # reduction axis (tiles within a split)

    @pl.when(j == 0)
    def _init():
        acc_ref[...] = jnp.zeros_like(acc_ref)

    x1t = x1t_ref[...].astype(jnp.float32)     # (D, TB)  lane-dense
    tgt = tgt_ref[...]                         # (1, TB)  int32
    tabn = tabn_ref[...]                       # (C, D)   f32, rows pre-normalized

    # P[c, col] = <table_n[c, :], x1[:, col]>  -- K=10 contraction on the MXU.
    p = jnp.dot(tabn, x1t, preferred_element_type=jnp.float32)        # (C, TB)

    # One-hot pick of the target class row: s12 / ||x2||.
    cls = lax.broadcasted_iota(jnp.int32, (_NUM_CLASSES, tile_cols), 0)
    s12n = jnp.sum(jnp.where(cls == tgt, p, 0.0), axis=0, keepdims=True)  # (1, TB)

    s11 = jnp.sum(x1t * x1t, axis=0, keepdims=True)                       # (1, TB)

    # cos = s12 / (||x1|| ||x2||) = s12n * rsqrt(||x1||^2)   (no eps clamp,
    # matching the reference module exactly).
    per_col = 1.0 - s12n * lax.rsqrt(s11)                                  # (1, TB)

    if padded_cols != batch:   # static: only emit masking when actually needed
        tile = pl.program_id(0) * tiles_per_split + j
        col = tile * tile_cols + lax.broadcasted_iota(jnp.int32, (1, tile_cols), 1)
        per_col = jnp.where(col < batch, per_col, 0.0)

    acc_ref[...] += jnp.sum(per_col, axis=1, keepdims=True)

    @pl.when(j == pl.num_programs(1) - 1)
    def _finalize():
        # Write this split's partial sum into lane 0 of its output block
        # (other lanes are zero, so the wrapper can just sum the whole output).
        lane = lax.broadcasted_iota(jnp.int32, (1, 128), 1)
        out_ref[...] = jnp.where(lane == 0, acc_ref[...], 0.0)


def cosine_similarity_loss(x1, target, *, block_cols=16384):
    """x1: (B, 10) float array of model outputs; target: (B,) int labels in [0, 9]."""
    B, D = x1.shape
    assert D == _FEAT_DIM, f"expected feature dim {_FEAT_DIM}, got {D}"
    assert block_cols % 128 == 0

    tabn = jnp.asarray(_TABLE_NORMED, dtype=jnp.float32)    # (10, 10)

    # Lane-dense presentation: features on sublanes, batch on lanes.
    x1t = jnp.transpose(x1)                                  # (D, B)
    tgt = jnp.reshape(target.astype(jnp.int32), (1, B))      # (1, B)

    tb = min(block_cols, pl.cdiv(B, 128) * 128)              # lane-aligned tile
    nblk = pl.cdiv(B, tb)
    n_split = 2 if nblk >= 2 else 1        # v7x megacore split; plain outer loop on 1-TC chips
    tiles_per_split = pl.cdiv(nblk, n_split)
    padded_cols = n_split * tiles_per_split * tb

    if padded_cols != B:
        pad = padded_cols - B
        # Pad x1 columns with a non-zero constant so padded columns stay finite;
        # they are masked out of the sum inside the kernel.
        x1t = jnp.pad(x1t, ((0, 0), (0, pad)), constant_values=1.0)
        tgt = jnp.pad(tgt, ((0, 0), (0, pad)), constant_values=0)

    kernel = functools.partial(
        _cosine_loss_kernel,
        tile_cols=tb, tiles_per_split=tiles_per_split,
        batch=B, padded_cols=padded_cols)

    partials = pl.pallas_call(
        kernel,
        out_shape=jax.ShapeDtypeStruct((1, 128 * n_split), jnp.float32),
        grid=(n_split, tiles_per_split),
        in_specs=[
            pl.BlockSpec((D, tb), lambda i, j, t=tiles_per_split: (0, i * t + j)),
            pl.BlockSpec((1, tb), lambda i, j, t=tiles_per_split: (0, i * t + j)),
            pl.BlockSpec((_NUM_CLASSES, D), lambda i, j: (0, 0)),   # constant table
        ],
        out_specs=pl.BlockSpec((1, 128), lambda i, j: (0, i)),      # per-split partial
        scratch_shapes=[pltpu.VMEM((1, 1), jnp.float32)],
        compiler_params=pltpu.CompilerParams(
            dimension_semantics=("parallel", "arbitrary")),
    )(x1t, tgt, tabn)

    # Non-lane-0 entries of each per-split block are zero -> plain sum works.
    return (jnp.sum(partials) / B).astype(x1.dtype)


def _reference_loss(x1, target):
    # Pure-numpy reference mirroring the PyTorch forward.
    x1 = np.asarray(x1, dtype=np.float64)
    x2 = _TARGET_TABLE[np.asarray(target)].astype(x1.dtype)
    s12 = (x1 * x2).sum(axis=1)
    n1 = np.sqrt((x1 * x1).sum(axis=1))
    n2 = np.sqrt((x2 * x2).sum(axis=1))
    return np.mean(1.0 - s12 / (n1 * n2))


if __name__ == "__main__":
    key = jax.random.PRNGKey(0)
    k1, k2, k3, k4, k5, k6 = jax.random.split(key, 6)

    # Small shapes consistent with the module: (B, 10) model outputs + (B,) labels.
    B, C = 8, 10
    x1 = jax.random.normal(k1, (B, C), dtype=jnp.float32)
    target = jax.random.randint(k2, (B,), 0, 10, dtype=jnp.int32)
    loss = jax.block_until_ready(cosine_similarity_loss(x1, target))
    ref = _reference_loss(np.asarray(x1), np.asarray(target))
    assert np.allclose(float(loss), ref, rtol=1e-4, atol=1e-5), (float(loss), ref)

    # Padded single-tile path (B not a multiple of 128).
    B2 = 37
    x1b = jax.random.normal(k3, (B2, C), dtype=jnp.float32)
    tgtb = jax.random.randint(k4, (B2,), 0, 10, dtype=jnp.int32)
    loss2 = jax.block_until_ready(cosine_similarity_loss(x1b, tgtb))
    ref2 = _reference_loss(np.asarray(x1b), np.asarray(tgtb))
    assert np.allclose(float(loss2), ref2, rtol=1e-4, atol=1e-5), (float(loss2), ref2)

    # Multi-tile + 2-way parallel split + partial-tile masking path.
    B3 = 300
    x1c = jax.random.normal(k5, (B3, C), dtype=jnp.float32)
    tgtc = jax.random.randint(k6, (B3,), 0, 10, dtype=jnp.int32)
    loss3 = jax.block_until_ready(cosine_similarity_loss(x1c, tgtc, block_cols=128))
    ref3 = _reference_loss(np.asarray(x1c), np.asarray(tgtc))
    assert np.allclose(float(loss3), ref3, rtol=1e-4, atol=1e-5), (float(loss3), ref3)

    print("KERNEL_OK")
</pallas_src>

<mosaic_0001>
module attributes {stable_mosaic.version = 11 : i64} {
  func.func @_cosine_loss_kernel(%arg0: i32, %arg1: i32, %arg2: memref<10x128xf32, #tpu.memory_space<vmem>>, %arg3: memref<1x128xi32, #tpu.memory_space<vmem>>, %arg4: memref<10x10xf32, #tpu.memory_space<vmem>>, %arg5: memref<1x128xf32, #tpu.memory_space<vmem>>, %arg6: memref<1x1xf32, #tpu.memory_space<vmem>>) attributes {dimension_semantics = [#tpu.dimension_semantics<parallel>, #tpu.dimension_semantics<arbitrary>], iteration_bounds = array<i64: 1, 1>, scalar_prefetch = 0 : i64, scratch_operands = 1 : i64, tpu.core_type = #tpu.core_type<tc>, window_params = [{transform_indices = @transform_0, window_bounds = array<i64: 10, 128>}, {transform_indices = @transform_1, window_bounds = array<i64: 1, 128>}, {pipeline_mode = #tpu.pipeline_mode<synchronous>, transform_indices = @transform_2, window_bounds = array<i64: 10, 10>}, {transform_indices = @transform_3, window_bounds = array<i64: 1, 128>}]} {
    %c0_i32 = arith.constant 0 : i32
    %0 = arith.cmpi eq, %arg1, %c0_i32 : i32
    %1 = arith.extui %0 : i1 to i32
    %c0_i32_0 = arith.constant 0 : i32
    %2 = arith.cmpi ne, %1, %c0_i32_0 : i32
    scf.if %2 {
      %cst_18 = arith.constant 0.000000e+00 : f32
      %39 = vector.broadcast %cst_18 : f32 to vector<1x1xf32>
      %c0_19 = arith.constant 0 : index
      %c0_20 = arith.constant 0 : index
      %40 = vector.load %arg6[%c0_19, %c0_20] : memref<1x1xf32, #tpu.memory_space<vmem>>, vector<1x1xf32>
      tpu.vector_store %arg6[%c0_19, %c0_20], %39 {strides = array<i32>} : memref<1x1xf32, #tpu.memory_space<vmem>>, vector<1x1xf32>,
    } else {
    }
    %c0 = arith.constant 0 : index
    %c0_1 = arith.constant 0 : index
    %3 = vector.load %arg2[%c0, %c0_1] : memref<10x128xf32, #tpu.memory_space<vmem>>, vector<10x128xf32>
    %c0_2 = arith.constant 0 : index
    %c0_3 = arith.constant 0 : index
    %4 = vector.load %arg3[%c0_2, %c0_3] : memref<1x128xi32, #tpu.memory_space<vmem>>, vector<1x128xi32>
    %c0_4 = arith.constant 0 : index
    %c0_5 = arith.constant 0 : index
    %5 = vector.load %arg4[%c0_4, %c0_5] : memref<10x10xf32, #tpu.memory_space<vmem>>, vector<10x10xf32>
    %cst = arith.constant dense<0.000000e+00> : vector<10x128xf32>
    %6 = tpu.matmul %5, %3, %cst {dimension_numbers = #tpu.dot_dimension_numbers<[1], [0], [0], [1], [0, 0, 1, 1], [], []>} : vector<10x10xf32>, vector<10x128xf32>, vector<10x128xf32> -> vector<10x128xf32>
    %7 = tpu.iota {dimensions = array<i32: 0>} : vector<10x128xi32>
    %8 = vector.broadcast %4 : vector<1x128xi32> to vector<10x128xi32>
    %9 = arith.cmpi eq, %7, %8 : vector<10x128xi32>
    %cst_6 = arith.constant 0.000000e+00 : f32
    %10 = vector.broadcast %cst_6 : f32 to vector<10x128xf32>
    %11 = arith.select %9, %6, %10 : vector<10x128xi1>, vector<10x128xf32>
    %cst_7 = arith.constant dense<0.000000e+00> : vector<128xf32>
    %12 = vector.multi_reduction <add>, %11, %cst_7 [0] : vector<10x128xf32> to vector<128xf32>
    %13 = vector.shape_cast %12 : vector<128xf32> to vector<1x128xf32>
    %14 = arith.mulf %3, %3 : vector<10x128xf32>
    %cst_8 = arith.constant dense<0.000000e+00> : vector<128xf32>
    %15 = vector.multi_reduction <add>, %14, %cst_8 [0] : vector<10x128xf32> to vector<128xf32>
    %16 = vector.shape_cast %15 : vector<128xf32> to vector<1x128xf32>
    %17 = math.rsqrt %16 : vector<1x128xf32>
    %18 = arith.mulf %13, %17 : vector<1x128xf32>
    %cst_9 = arith.constant 1.000000e+00 : f32
    %19 = vector.broadcast %cst_9 : f32 to vector<1x128xf32>
    %20 = arith.subf %19, %18 : vector<1x128xf32>
    %c1_i32 = arith.constant 1 : i32
    %21 = arith.muli %arg0, %c1_i32 : i32
    %22 = arith.addi %21, %arg1 : i32
    %c128_i32 = arith.constant 128 : i32
    %23 = arith.muli %22, %c128_i32 : i32
    %24 = tpu.iota {dimensions = array<i32: 1>} : vector<1x128xi32>
    %25 = vector.broadcast %23 : i32 to vector<1x128xi32>
    %26 = arith.addi %25, %24 : vector<1x128xi32>
    %c8_i32 = arith.constant 8 : i32
    %27 = vector.broadcast %c8_i32 : i32 to vector<1x128xi32>
    %28 = arith.cmpi slt, %26, %27 : vector<1x128xi32>
    %cst_10 = arith.constant 0.000000e+00 : f32
    %29 = vector.broadcast %cst_10 : f32 to vector<1x128xf32>
    %30 = arith.select %28, %20, %29 : vector<1x128xi1>, vector<1x128xf32>
    %c0_11 = arith.constant 0 : index
    %c0_12 = arith.constant 0 : index
    %31 = vector.load %arg6[%c0_11, %c0_12] : memref<1x1xf32, #tpu.memory_space<vmem>>, vector<1x1xf32>
    %cst_13 = arith.constant dense<0.000000e+00> : vector<1xf32>
    %32 = vector.multi_reduction <add>, %30, %cst_13 [1] : vector<1x128xf32> to vector<1xf32>
    %33 = vector.shape_cast %32 : vector<1xf32> to vector<1x1xf32>
    %34 = arith.addf %31, %33 : vector<1x1xf32>
    %c0_14 = arith.constant 0 : index
    %c0_15 = arith.constant 0 : index
    %35 = vector.load %arg6[%c0_14, %c0_15] : memref<1x1xf32, #tpu.memory_space<vmem>>, vector<1x1xf32>
    tpu.vector_store %arg6[%c0_14, %c0_15], %34 {strides = array<i32>} : memref<1x1xf32, #tpu.memory_space<vmem>>, vector<1x1xf32>,
    %c0_i32_16 = arith.constant 0 : i32
    %36 = arith.cmpi eq, %arg1, %c0_i32_16 : i32
    %37 = arith.extui %36 : i1 to i32
    %c0_i32_17 = arith.constant 0 : i32
    %38 = arith.cmpi ne, %37, %c0_i32_17 : i32
    scf.if %38 {
      %39 = tpu.iota {dimensions = array<i32: 1>} : vector<1x128xi32>
      %c0_i32_18 = arith.constant 0 : i32
      %40 = vector.broadcast %c0_i32_18 : i32 to vector<1x128xi32>
      %41 = arith.cmpi eq, %39, %40 : vector<1x128xi32>
      %c0_19 = arith.constant 0 : index
      %c0_20 = arith.constant 0 : index
      %42 = vector.load %arg6[%c0_19, %c0_20] : memref<1x1xf32, #tpu.memory_space<vmem>>, vector<1x1xf32>
      %cst_21 = arith.constant 0.000000e+00 : f32
      %43 = vector.shape_cast %42 : vector<1x1xf32> to vector<1x1xf32>
      %44 = vector.broadcast %43 : vector<1x1xf32> to vector<1x128xf32>
      %45 = vector.broadcast %cst_21 : f32 to vector<1x128xf32>
      %46 = arith.select %41, %44, %45 : vector<1x128xi1>, vector<1x128xf32>
      %c0_22 = arith.constant 0 : index
      %c0_23 = arith.constant 0 : index
      %47 = vector.load %arg5[%c0_22, %c0_23] : memref<1x128xf32, #tpu.memory_space<vmem>>, vector<1x128xf32>
      tpu.vector_store %arg5[%c0_22, %c0_23], %46 {strides = array<i32>} : memref<1x128xf32, #tpu.memory_space<vmem>>, vector<1x128xf32>,
    } else {
    }
    return
  }
  func.func @transform_0(%arg0: i32, %arg1: i32) -> (i32, i32) {
    %c1_i32 = arith.constant 1 : i32
    %0 = arith.muli %arg0, %c1_i32 : i32
    %1 = arith.addi %0, %arg1 : i32
    %c0_i32 = arith.constant 0 : i32
    %c0_i32_0 = arith.constant 0 : i32
    return %c0_i32, %1 : i32, i32
  }
  func.func @transform_1(%arg0: i32, %arg1: i32) -> (i32, i32) {
    %c1_i32 = arith.constant 1 : i32
    %0 = arith.muli %arg0, %c1_i32 : i32
    %1 = arith.addi %0, %arg1 : i32
    %c0_i32 = arith.constant 0 : i32
    %c0_i32_0 = arith.constant 0 : i32
    return %c0_i32, %1 : i32, i32
  }
  func.func @transform_2(%arg0: i32, %arg1: i32) -> (i32, i32) {
    %c0_i32 = arith.constant 0 : i32
    %c0_i32_0 = arith.constant 0 : i32
    %c0_i32_1 = arith.constant 0 : i32
    return %c0_i32, %c0_i32_0 : i32, i32
  }
  func.func @transform_3(%arg0: i32, %arg1: i32) -> (i32, i32) {
    %c0_i32 = arith.constant 0 : i32
    %c0_i32_0 = arith.constant 0 : i32
    return %c0_i32, %arg0 : i32, i32
  }
}

</mosaic_0001>

<llo_original>
// kernel: tpu_custom_call.1
$region0: #{tpu_custom_call.1}
  #allocation0 [shape = 'u32[]', space=smem, size = 0x4, offset = 0x4, fixed_abs, tag = 'smem constant byte address 0x4 - core index']
  #allocation1 [shape = 'u32[144,128]{1,0:T(1,128)}', space=vmem, size = 0x12000, scoped, tag = 'internal scratch']
  #allocation2 [shape = 'f32[1,1]{1,0:T(1,128)}', space=vmem, size = 0x200, scoped, tag = 'scratch operand']
  %s0 = inlined_call_operand.hbm [shape: f32[10,128], index: 0, kind: input, shape index: {}]
  %s1 = inlined_call_operand.vmem [shape: s32[1,128], index: 1, kind: input, shape index: {}]
  %s2 = inlined_call_operand.hbm [shape: f32[10,10], index: 2, kind: input, shape index: {}]
  %s3 = inlined_call_operand.hbm [shape: f32[1,128], index: 3, kind: output, shape index: {}]
  %s4 = sld [smem:[#allocation0]]
  $region38: #{tpu_custom_call.1} parent=0
    _
  %s6 = ssub.s32 1, %s4
  %s7 = scalar_select 0, %s6, %s4
  $region1: #{tpu_custom_call.1} parent=0
    #allocation3 [shape = 'u8[8192]{0}', space=vmem, size = 0x2000, scoped, tag = 'input window, operand 0, single buffered']
    #allocation4 [shape = 's32[1]{0}', space=sflag, size = 0x4, scoped, tag = 'scoped memory for tpu_custom_call.1']
    #allocation5 [shape = 's32[1]{0}', space=sflag, size = 0x4, scoped, tag = 'scoped memory for tpu_custom_call.1']
    #allocation6 [shape = 'u8[8192]{0}', space=vmem, size = 0x2000, scoped, tag = 'input window, operand 2, single buffered']
    #allocation7 [shape = 's32[1]{0}', space=sflag, size = 0x4, scoped, tag = 'scoped memory for tpu_custom_call.1']
    #allocation8 [shape = 'u8[512]{0}', space=vmem, size = 0x400, scoped, tag = 'output window, operand 0, single buffered']
    %8 = vsyncpa [#allocation4], 0
    %9 = vsyncpa [#allocation7], 0
    %10 = vsyncpa [#allocation5], 0
    // Predicated region
    $region2: #{tpu_custom_call.1} parent=1 // pred_check
      _
    $region3: #{tpu_custom_call.1} parent=1 // pred_check_branch
      %12 = sbr.rel (0) target = $region5
    $region4: #{tpu_custom_call.1} parent=1 // pred_region
      %s13 = sadd.s32 0, 0
      %s15 = ssub.s32 256, 256
      %16 = vsyncadd [#allocation4], %s15
      %s17 = smul.addr %s13, 128
      %s18 = scalar_lea.hbm %s0, %s17
      %s19 = sshll.u32 [#allocation3], 4
      %s20 = int_to_ptr.vmem [resolvable:$true] %s19
      %25 = dma.hbm_to_vmem [thread:$0]  %s18, 256, %s20, [#allocation4], 128, 128, 8
    $region5: #{tpu_custom_call.1} parent=1 // pred_fallthru
      _
    // Predicated region
    $region6: #{tpu_custom_call.1} parent=1 // pred_check
      _
    $region7: #{tpu_custom_call.1} parent=1 // pred_check_branch
      %27 = sbr.rel (0) target = $region9
    $region8: #{tpu_custom_call.1} parent=1 // pred_region
      %s28 = sadd.s32 0, 0
      %p29 = scmp.lt.s32.totalorder %s28, 0
      %s30 = scalar_select %p29, %s28, 0
      %s31 = scalar_lea.vmem %s1, %s30
      %s32 = sadd.s32 0, 0
    $region9: #{tpu_custom_call.1} parent=1 // pred_fallthru
      _
    // Predicated region
    $region10: #{tpu_custom_call.1} parent=1 // pred_check
      _
    $region11: #{tpu_custom_call.1} parent=1 // pred_check_branch
      %34 = sbr.rel (0) target = $region13
    $region12: #{tpu_custom_call.1} parent=1 // pred_region
      %s36 = ssub.s32 256, 256
      %37 = vsyncadd [#allocation7], %s36
      %s38 = sshll.u32 [#allocation6], 4
      %s39 = int_to_ptr.vmem [resolvable:$true] %s38
      %44 = dma.hbm_to_vmem [thread:$0]  %s2, 256, %s39, [#allocation7], 128, 128, 8
    $region13: #{tpu_custom_call.1} parent=1 // pred_fallthru
      _
    // Predicated region
    $region14: #{tpu_custom_call.1} parent=1 // pred_check
      _
    $region15: #{tpu_custom_call.1} parent=1 // pred_check_branch
      %46 = sbr.rel (0) target = $region17
    $region16: #{tpu_custom_call.1} parent=1 // pred_region
      %47 = dma.done [#allocation4], 256
    $region17: #{tpu_custom_call.1} parent=1 // pred_fallthru
      _
    // Predicated region
    $region18: #{tpu_custom_call.1} parent=1 // pred_check
      _
    $region19: #{tpu_custom_call.1} parent=1 // pred_check_branch
      %49 = sbr.rel (0) target = $region21
    $region20: #{tpu_custom_call.1} parent=1 // pred_region
      %50 = dma.done [#allocation7], 256
    $region21: #{tpu_custom_call.1} parent=1 // pred_fallthru
      _
    %s51 = sadd.s32 0, 0
    %p52 = scmp.lt.s32.totalorder %s51, 0
    %s53 = scalar_select %p52, %s51, 0
    %s54 = scalar_lea.vmem %s1, %s53
    %s55 = sadd.s32 0, 0
    %s56 = sadd.s32 0, 0
    %p57 = scmp.lt.s32.totalorder %s56, 0
    %s58 = scalar_select %p57, %s56, 0
    %s59 = scalar_lea.vmem %s1, %s58
    %s60 = sadd.s32 0, 0
    %p61 = scmp.eq.s32.totalorder 0, 0
    // Predicated region
    $region22: #{tpu_custom_call.1} parent=1 // pred_check
      %p62 = pneg %p61
    $region23: #{tpu_custom_call.1} parent=1 // pred_check_branch
      %64 = sbr.rel (%p62) target = $region25
    $region24: #{tpu_custom_call.1} parent=1 // pred_region
      %vm65 = vcmask 0
      %66 = vst.msk [vmem:[#allocation2] sm:$0x1] %vm65, 0.0
    $region25: #{tpu_custom_call.1} parent=1 // pred_fallthru
      _
    %v67 = vld [vmem:[#allocation3] sm:$0xff]
    %v68 = vld [vmem:[#allocation3 + $0x8] sm:$0x3]
    %v69 = vld [vmem:[%s59] sm:$0x1]
    %v70 = vld [vmem:[#allocation6] sm:$0xff]
    %v71 = vld [vmem:[#allocation6 + $0x8] sm:$0x3]
    %vm72 = vcmask 80896
    %v74 = vsel %vm72, %v70, 0
    %v77 = vsel %vm72, %v71, 0
    %vm79 = vcmask 1041408
    %v81 = vsel %vm79, %v68, 0
    %83 = vmatprep.subr.mxu0 0.0
    %84 = vmatpush1.msra.mxu0 %v67
    %85 = vmatprep.subr.mxu0 0.0
    %86 = vmatpush1.msra.mxu0 %v81
    %87 = vmatprep.subr.mxu0 0.0
    %88 = vmatpush1.msra.mxu0 0.0
    %89 = vmatprep.subr.mxu0 0.0
    %90 = vmatpush1.msra.mxu0 0.0
    %91 = vmatprep.subr.mxu0 0.0
    %92 = vmatpush1.msra.mxu0 0.0
    %93 = vmatprep.subr.mxu0 0.0
    %94 = vmatpush1.msra.mxu0 0.0
    %95 = vmatprep.subr.mxu0 0.0
    %96 = vmatpush1.msra.mxu0 0.0
    %97 = vmatprep.subr.mxu0 0.0
    %98 = vmatpush1.msra.mxu0 0.0
    %99 = vmatprep.subr.mxu0 0.0
    %100 = vmatpush1.msra.mxu0 0.0
    %101 = vmatprep.subr.mxu0 0.0
    %102 = vmatpush1.msra.mxu0 0.0
    %103 = vmatprep.subr.mxu0 0.0
    %104 = vmatpush1.msra.mxu0 0.0
    %105 = vmatprep.subr.mxu0 0.0
    %106 = vmatpush1.msra.mxu0 0.0
    %107 = vmatprep.subr.mxu0 0.0
    %108 = vmatpush1.msra.mxu0 0.0
    %109 = vmatprep.subr.mxu0 0.0
    %110 = vmatpush1.msra.mxu0 0.0
    %111 = vmatprep.subr.mxu0 0.0
    %112 = vmatpush1.msra.mxu0 0.0
    %113 = vmatprep.subr.mxu0 0.0
    %114 = vmatpush1.msra.mxu0 0.0
    %115 = vmatprep.subr.mxu0 0.0
    %116 = vmatpush1.msra.mxu0 0.0
    %117 = vmatprep.subr.mxu0 0.0
    %118 = vmatpush1.msra.mxu0 0.0
    %119 = vmatprep.subr.mxu0 0.0
    %120 = vmatpush1.msra.mxu0 0.0
    %121 = vmatprep.subr.mxu0 0.0
    %122 = vmatpush1.msra.mxu0 0.0
    %123 = vmatprep.subr.mxu0 0.0
    %124 = vmatpush1.msra.mxu0 0.0
    %125 = vmatprep.subr.mxu0 0.0
    %126 = vmatpush1.msra.mxu0 0.0
    %127 = vmatprep.subr.mxu0 0.0
    %128 = vmatpush1.msra.mxu0 0.0
    %129 = vmatprep.subr.mxu0 0.0
    %130 = vmatpush1.msra.mxu0 0.0
    %131 = vmatprep.subr.mxu0 0.0
    %132 = vmatpush1.msra.mxu0 0.0
    %133 = vmatprep.subr.mxu0 0.0
    %134 = vmatpush1.msra.mxu0 0.0
    %135 = vmatprep.subr.mxu0 0.0
    %136 = vmatpush1.msra.mxu0 0.0
    %137 = vmatprep.subr.mxu0 0.0
    %138 = vmatpush1.msra.mxu0 0.0
    %139 = vmatprep.subr.mxu0 0.0
    %140 = vmatpush1.msra.mxu0 0.0
    %141 = vmatprep.subr.mxu0 0.0
    %142 = vmatpush1.msra.mxu0 0.0
    %143 = vmatprep.subr.mxu0 0.0
    %144 = vmatpush1.msra.mxu0 0.0
    %145 = vmatprep.subr.mxu0 0.0
    %146 = vmatpush1.msra.mxu0 0.0
    %147 = vmatprep.mubr.f32.mxu0 0.0
    %148 = vmatmul.mubr.f32.gmra.mrb[0].mxu0 %v74
    %v149 = vpop.f32.mrb[0].mxu0
    %v150 = vadd.f32 0.0, %v149
    %v151 = vpop.f32.mrb[0].mxu0
    %152 = vmatprep.mubr.f32.mxu0 0.0
    %153 = vmatmul.mubr.f32.gmra.mrb[0].mxu0 %v77
    %v154 = vpop.f32.mrb[0].mxu0
    %v155 = vadd.f32 0.0, %v154
    %v156 = vpop.f32.mrb[0].mxu0
    %157 = vdwg.mxu0
    %v158 = vlaneseq
    %v159 = vshrl.u32 %v158, 7
    %v160 = vadd.s32 %v159, 8
    %v161 = vlaneseq
    %v162 = vshrl.u32 %v161, 7
    %v163 = vsub.s32 0, %v162
    %v164 = vrot.slane %v69, %v163
    %vm165 = vcmp.eq.s32.totalorder %v159, %v164
    %vm166 = vcmp.eq.s32.totalorder %v160, %v164
    %v167 = vsel %vm165, %v150, 0.0
    %v168 = vsel %vm166, %v155, 0.0
    %v169 = vsel %vm79, %v168, 0.0
    %v170 = vadd.f32 %v167, %v169
    %v171 = vrot.slane %v170, 4
    %v172 = vadd.f32 %v170, %v171
    %v173 = vrot.slane %v172, 2
    %v174 = vadd.f32 %v172, %v173
    %v175 = vrot.slane %v174, 1
    %v176 = vadd.f32 %v174, %v175
    %v177 = vmul.f32 %v67, %v67
    %v178 = vmul.f32 %v68, %v68
    %v179 = vsel %vm79, %v178, 0.0
    %v180 = vadd.f32 %v177, %v179
    %v181 = vrot.slane %v180, 4
    %v182 = vadd.f32 %v180, %v181
    %v183 = vrot.slane %v182, 2
    %v184 = vadd.f32 %v182, %v183
    %v185 = vrot.slane %v184, 1
    %v186 = vadd.f32 %v184, %v185
    %v187 = vrsqrt.pop %v186
    %v188 = vmul.f32 %v176, %v187
    %v189 = vsub.f32 1.0, %v188
    %s190 = sadd.s32 0, 0
    %s191 = smul.u32 %s190, 128
    %v192 = vlaneseq
    %v193 = vand.u32 %v192, 127
    %v194 = vstv %s191
    %v195 = vadd.s32 %v194, %v193
    %vm196 = vcmp.lt.s32.totalorder %v195, 8
    %v197 = vsel %vm196, %v189, 0.0
    %v198 = vld [vmem:[#allocation2] sm:$0x1]
    %199 = vadd.xlane.f32.xlu0 %v197
    %v200 = vpop.xlane.xlu0 %199
    %v201 = vadd.f32 %v198, %v200
    %vm202 = vcmask 0
    %203 = vst.msk [vmem:[#allocation2] sm:$0x1] %vm202, %v201
    // Predicated region
    $region26: #{tpu_custom_call.1} parent=1 // pred_check
      %p204 = pneg %p61
    $region27: #{tpu_custom_call.1} parent=1 // pred_check_branch
      %206 = sbr.rel (%p204) target = $region29
    $region28: #{tpu_custom_call.1} parent=1 // pred_region
      %vm207 = vcmp.eq.s32.totalorder %v193, 0
      %v208 = vld [vmem:[#allocation2] sm:$0x1]
      %210 = vset.pattern.permute.xlu0 0
      %211 = vperm.xlu0 %210, %v208
      %v212 = vpop.permute.xlu0 %211
      %v214 = vlaneseq
      %v215 = vshrl.u32 %v214, 7
      %v216 = vsub.s32 0, %v215
      %v217 = vrot.slane %v212, %v216
      %v218 = vsel %vm207, %v217, 0.0
      %219 = vst [vmem:[#allocation8] sm:$0x1] %v218
    $region29: #{tpu_custom_call.1} parent=1 // pred_fallthru
      _
    // Predicated region
    $region30: #{tpu_custom_call.1} parent=1 // pred_check
      _
    $region31: #{tpu_custom_call.1} parent=1 // pred_check_branch
      %221 = sbr.rel (0) target = $region33
    $region32: #{tpu_custom_call.1} parent=1 // pred_region
      %s223 = ssub.s32 16, 16
      %224 = vsyncadd [#allocation5], %s223
      %s226 = sshll.u32 [#allocation8], 4
      %s227 = int_to_ptr.vmem [resolvable:$true] %s226
      %229 = dma.vmem_to_hbm [thread:$0]  %s227, 16, %s3, [#allocation5]
    $region33: #{tpu_custom_call.1} parent=1 // pred_fallthru
      _
    // Predicated region
    $region34: #{tpu_custom_call.1} parent=1 // pred_check
      _
    $region35: #{tpu_custom_call.1} parent=1 // pred_check_branch
      %231 = sbr.rel (0) target = $region37
    $region36: #{tpu_custom_call.1} parent=1 // pred_region
      %232 = dma.done [#allocation5], 16
    $region37: #{tpu_custom_call.1} parent=1 // pred_fallthru
      _
    %233 = vsyncpa [#allocation4], 1
    %234 = vsyncpa [#allocation7], 1
    %235 = vsyncpa [#allocation5], 1

</llo_original>
